<compile_context>
chip_gen: v5e
topology: v5e:2x2
jax: 0.10.0
libtpu: 0.0.40
codegen_flags: <defaults>
</compile_context>

<pallas_src>
import math
import functools

import jax
import jax.numpy as jnp
from jax.experimental import pallas as pl
from jax.experimental.pallas import tpu as pltpu


_TWO_PI = 2.0 * math.pi


def _learned_sinpos_kernel(x_ref, w_ref, o_ref, *, half_dim, pad_last_col):
    # x_ref: (tb, 1) f32  -- timesteps, batch on sublanes
    # w_ref: (1, C)  f32  -- pre-arranged frequency row [0, w, w, (0)], C = emb_dim+1
    # o_ref: (tb, C)      -- [x | sin(x*w*2pi) | cos(x*w*2pi) | (zero pad)]
    x = x_ref[...]                                       # (tb, 1)
    w_row = w_ref[...] * _TWO_PI                         # (1, C): C muls, not tb*C
    args = x * w_row                                     # (tb, C) single broadcast multiply
    col = jax.lax.broadcasted_iota(jnp.int32, args.shape, 1)
    out = jnp.where(col <= half_dim, jnp.sin(args), jnp.cos(args))   # sin band | cos band
    out = jnp.where(col == 0, x, out)                    # column 0 carries the raw timestep
    if pad_last_col:                                     # odd emb_dim -> trailing zero column
        out = jnp.where(col == args.shape[1] - 1, 0.0, out)
    o_ref[...] = out.astype(o_ref.dtype)                 # one dense full-block store


def learned_sinusoidal_pos_emb(x, weights, emb_dim, *, out_dtype=jnp.float32,
                               block_b=1024):
    """Pallas forward of LearnedSinusoidalPosEmb.

    x:       (B,) timesteps (any float/int dtype; computed in f32).
    weights: (emb_dim // 2,) learned frequency parameters.
    returns: (B, emb_dim + 1) == cat([x, sin, cos], -1) (+ zero col if emb_dim odd).
    """
    half_dim = emb_dim // 2
    pad_last = (emb_dim % 2 == 1)
    out_cols = emb_dim + 1

    # Pre-arranged frequency row [0, w, w, (0)] -> (1, out_cols). O(emb_dim) prep on
    # the parameter; lets the kernel avoid any unaligned lane concat / slice stores.
    w = jnp.asarray(weights, jnp.float32).reshape(half_dim)
    zero = jnp.zeros((1,), jnp.float32)
    parts = [zero, w, w] + ([zero] if pad_last else [])
    w_row = jnp.concatenate(parts).reshape(1, out_cols)

    x = jnp.asarray(x, jnp.float32).reshape(-1, 1)       # (B, 1): batch on sublanes
    B = x.shape[0]

    # Tile the batch (sublane) axis. For small B the block equals the full array
    # (8,128 rule waived); for large B use block_b-row blocks (multiple of 8) and
    # pad the batch up to a block multiple.
    tb = B if B <= block_b else block_b
    Bp = ((B + tb - 1) // tb) * tb
    if Bp != B:
        x = jnp.pad(x, ((0, Bp - B), (0, 0)))
    nb = Bp // tb

    kernel = functools.partial(
        _learned_sinpos_kernel, half_dim=half_dim, pad_last_col=pad_last)

    out = pl.pallas_call(
        kernel,
        out_shape=jax.ShapeDtypeStruct((Bp, out_cols), out_dtype),
        grid=(nb,),
        in_specs=[
            pl.BlockSpec((tb, 1), lambda i: (i, 0)),          # timesteps
            pl.BlockSpec((1, out_cols), lambda i: (0, 0)),    # frequency row (resident)
        ],
        out_specs=pl.BlockSpec((tb, out_cols), lambda i: (i, 0)),
        compiler_params=pltpu.CompilerParams(
            dimension_semantics=("parallel",)),               # 2 TCs on v7x
    )(x, w_row)

    return out if Bp == B else out[:B]


def _reference(x, weights, emb_dim):
    x = jnp.asarray(x, jnp.float32)[:, None]
    w = jnp.asarray(weights, jnp.float32)[None, :]
    freqs = x * w * (2.0 * math.pi)
    out = jnp.concatenate([x, jnp.sin(freqs), jnp.cos(freqs)], axis=-1)
    if emb_dim % 2 == 1:
        out = jnp.pad(out, ((0, 0), (0, 1)))
    return out


if __name__ == "__main__":
    key = jax.random.PRNGKey(0)
    kx, kw, kx2 = jax.random.split(key, 3)

    # Case 1: small batch, even emb_dim (single-program, full-array block).
    B, emb_dim = 8, 16
    x = jax.random.uniform(kx, (B,), jnp.float32, minval=0.0, maxval=1.0)
    w = jax.random.normal(kw, (emb_dim // 2,), jnp.float32)  # learned weights
    out = jax.block_until_ready(learned_sinusoidal_pos_emb(x, w, emb_dim))
    ref = _reference(x, w, emb_dim)
    assert out.shape == (B, emb_dim + 1), out.shape
    assert jnp.allclose(out, ref, atol=1e-4, rtol=1e-4), \
        float(jnp.max(jnp.abs(out - ref)))

    # Case 2: odd emb_dim (exercises the zero-pad column path).
    emb_dim_odd = 17
    out2 = jax.block_until_ready(learned_sinusoidal_pos_emb(x, w, emb_dim_odd))
    ref2 = _reference(x, w, emb_dim_odd)
    assert out2.shape == (B, emb_dim_odd + 1), out2.shape
    assert jnp.allclose(out2, ref2, atol=1e-4, rtol=1e-4), \
        float(jnp.max(jnp.abs(out2 - ref2)))

    # Case 3: batch larger than one block (grid + batch-padding path).
    B3 = 1500
    x3 = jax.random.uniform(kx2, (B3,), jnp.float32, minval=0.0, maxval=1.0)
    out3 = jax.block_until_ready(learned_sinusoidal_pos_emb(x3, w, emb_dim))
    ref3 = _reference(x3, w, emb_dim)
    assert out3.shape == (B3, emb_dim + 1), out3.shape
    assert jnp.allclose(out3, ref3, atol=1e-4, rtol=1e-4), \
        float(jnp.max(jnp.abs(out3 - ref3)))

    print("KERNEL_OK")
</pallas_src>

<mosaic_0001>
module attributes {stable_mosaic.version = 11 : i64} {
  func.func @_learned_sinpos_kernel(%arg0: i32, %arg1: memref<8x1xf32, #tpu.memory_space<vmem>>, %arg2: memref<1x17xf32, #tpu.memory_space<vmem>>, %arg3: memref<8x17xf32, #tpu.memory_space<vmem>>) attributes {dimension_semantics = [#tpu.dimension_semantics<parallel>], iteration_bounds = array<i64: 1>, scalar_prefetch = 0 : i64, scratch_operands = 0 : i64, tpu.core_type = #tpu.core_type<tc>, window_params = [{transform_indices = @transform_0, window_bounds = array<i64: 8, 1>}, {pipeline_mode = #tpu.pipeline_mode<synchronous>, transform_indices = @transform_1, window_bounds = array<i64: 1, 17>}, {transform_indices = @transform_2, window_bounds = array<i64: 8, 17>}]} {
    %c0 = arith.constant 0 : index
    %c0_0 = arith.constant 0 : index
    %0 = vector.load %arg1[%c0, %c0_0] : memref<8x1xf32, #tpu.memory_space<vmem>>, vector<8x1xf32>
    %c0_1 = arith.constant 0 : index
    %c0_2 = arith.constant 0 : index
    %1 = vector.load %arg2[%c0_1, %c0_2] : memref<1x17xf32, #tpu.memory_space<vmem>>, vector<1x17xf32>
    %cst = arith.constant 6.28318548 : f32
    %2 = vector.broadcast %cst : f32 to vector<1x17xf32>
    %3 = arith.mulf %1, %2 : vector<1x17xf32>
    %4 = vector.broadcast %0 : vector<8x1xf32> to vector<8x17xf32>
    %5 = vector.broadcast %3 : vector<1x17xf32> to vector<8x17xf32>
    %6 = arith.mulf %4, %5 : vector<8x17xf32>
    %7 = tpu.iota {dimensions = array<i32: 1>} : vector<8x17xi32>
    %c8_i32 = arith.constant 8 : i32
    %8 = vector.broadcast %c8_i32 : i32 to vector<8x17xi32>
    %9 = arith.cmpi sle, %7, %8 : vector<8x17xi32>
    %10 = math.sin %6 : vector<8x17xf32>
    %11 = math.cos %6 : vector<8x17xf32>
    %12 = arith.select %9, %10, %11 : vector<8x17xi1>, vector<8x17xf32>
    %c0_i32 = arith.constant 0 : i32
    %13 = vector.broadcast %c0_i32 : i32 to vector<8x17xi32>
    %14 = arith.cmpi eq, %7, %13 : vector<8x17xi32>
    %15 = vector.shape_cast %0 : vector<8x1xf32> to vector<8x1xf32>
    %16 = vector.broadcast %15 : vector<8x1xf32> to vector<8x17xf32>
    %17 = arith.select %14, %16, %12 : vector<8x17xi1>, vector<8x17xf32>
    %c0_3 = arith.constant 0 : index
    %c0_4 = arith.constant 0 : index
    %18 = vector.load %arg3[%c0_3, %c0_4] : memref<8x17xf32, #tpu.memory_space<vmem>>, vector<8x17xf32>
    tpu.vector_store %arg3[%c0_3, %c0_4], %17 {strides = array<i32>} : memref<8x17xf32, #tpu.memory_space<vmem>>, vector<8x17xf32>,
    return
  }
  func.func @transform_0(%arg0: i32) -> (i32, i32) {
    %c0_i32 = arith.constant 0 : i32
    %c0_i32_0 = arith.constant 0 : i32
    return %arg0, %c0_i32 : i32, i32
  }
  func.func @transform_1(%arg0: i32) -> (i32, i32) {
    %c0_i32 = arith.constant 0 : i32
    %c0_i32_0 = arith.constant 0 : i32
    %c0_i32_1 = arith.constant 0 : i32
    return %c0_i32, %c0_i32_0 : i32, i32
  }
  func.func @transform_2(%arg0: i32) -> (i32, i32) {
    %c0_i32 = arith.constant 0 : i32
    %c0_i32_0 = arith.constant 0 : i32
    return %arg0, %c0_i32 : i32, i32
  }
}

</mosaic_0001>

<llo_original>
// kernel: tpu_custom_call.1
$region0: #{tpu_custom_call.1}
  #allocation0 [shape = 'u32[]', space=smem, size = 0x4, offset = 0x4, fixed_abs, tag = 'smem constant byte address 0x4 - core index']
  #allocation1 [shape = 'u32[72,128]{1,0:T(1,128)}', space=vmem, size = 0x9000, scoped, tag = 'internal scratch']
  %s0 = inlined_call_operand.vmem [shape: f32[8,1], index: 0, kind: input, shape index: {}]
  %s1 = inlined_call_operand.vmem [shape: f32[1,17], index: 1, kind: input, shape index: {}]
  %s2 = inlined_call_operand.hbm [shape: f32[8,17], index: 2, kind: output, shape index: {}]
  %s3 = sld [smem:[#allocation0]]
  $region18: #{tpu_custom_call.1} parent=0
    _
  %s5 = ssub.s32 1, %s3
  %s6 = scalar_select 0, %s5, %s3
  $region1: #{tpu_custom_call.1} parent=0
    #allocation2 [shape = 'u8[4096]{0}', space=vmem, size = 0x1000, scoped, tag = 'output window, operand 0, single buffered']
    #allocation3 [shape = 's32[1]{0}', space=sflag, size = 0x4, scoped, tag = 'scoped memory for tpu_custom_call.1']
    %7 = vsyncpa [#allocation3], 0
    // Predicated region
    $region2: #{tpu_custom_call.1} parent=1 // pred_check
      _
    $region3: #{tpu_custom_call.1} parent=1 // pred_check_branch
      %9 = sbr.rel (0) target = $region5
    $region4: #{tpu_custom_call.1} parent=1 // pred_region
      _
    $region5: #{tpu_custom_call.1} parent=1 // pred_fallthru
      _
    // Predicated region
    $region6: #{tpu_custom_call.1} parent=1 // pred_check
      _
    $region7: #{tpu_custom_call.1} parent=1 // pred_check_branch
      %11 = sbr.rel (0) target = $region9
    $region8: #{tpu_custom_call.1} parent=1 // pred_region
      _
    $region9: #{tpu_custom_call.1} parent=1 // pred_fallthru
      _
    %v12 = vld [vmem:[%s0] sm:$0xff]
    %v13 = vld [vmem:[%s1] sm:$0x1]
    %v14 = vmul.f32 %v13, 6.2831855
    %16 = vset.pattern.permute.xlu0 0
    %17 = vperm.xlu0 %16, %v12
    %v18 = vpop.permute.xlu0 %17
    %v21 = vperm.slane %v14, 0
    %v23 = vmul.f32 %v18, %v21
    %v24 = vlaneseq
    %v25 = vand.u32 %v24, 127
    %vm26 = vcmp.le.s32.totalorder %v25, 8
    %v27 = vand.u32 2147483647, %v23
    %vm28 = vcmp.le.f32.partialorder %v27, 0.7853982
    %vm29 = vcmp.lt.s32.totalorder %v23, 0
    %v30 = vand.u32 %v23, 2139095040
    %v31 = vshrl.u32 %v30, 23
    %v32 = vsub.s32 %v31, 127
    %v33 = vand.u32 2147483647, %v23
    %v34 = vand.u32 %v33, 8388607
    %v35 = vor.u32 %v34, 8388608
    %v36 = vsub.s32 0, %v35
    %v37 = vadd.s32 %v32, 1
    %vm38 = vcmp.gt.s32.totalorder %v37, 0
    %v39 = vsel %vm38, %v37, 0
    %v40 = vshrl.u32 %v39, 5
    %v41 = vand.u32 %v39, 31
    %v42 = vsub.s32 32, %v41
    %v43 = vshrl.u32 683565275, %v42
    %v44 = vshll.u32 683565275, %v41
    %v45 = vshrl.u32 2475754826, %v42
    %v46 = vor.u32 %v44, %v45
    %v47 = vshll.u32 2475754826, %v41
    %v48 = vshrl.u32 2131351028, %v42
    %v49 = vor.u32 %v47, %v48
    %v50 = vshll.u32 2131351028, %v41
    %v51 = vshrl.u32 2102212464, %v42
    %v52 = vor.u32 %v50, %v51
    %v53 = vshll.u32 2102212464, %v41
    %v54 = vshrl.u32 920167782, %v42
    %v55 = vor.u32 %v53, %v54
    %v56 = vshll.u32 920167782, %v41
    %v57 = vshrl.u32 1326507024, %v42
    %v58 = vor.u32 %v56, %v57
    %vm59 = vcmp.lt.s32.totalorder %v40, 1
    %vm60 = vcmp.lt.s32.totalorder %v40, 2
    %vm61 = vcmp.lt.s32.totalorder %v40, 3
    %vm62 = vcmp.lt.s32.totalorder %v40, 4
    %v63 = vsel %vm59, %v43, %v46
    %v64 = vsel %vm62, %v52, 2102212464
    %v65 = vsel %vm61, %v49, %v64
    %v66 = vsel %vm60, %v63, %v65
    %v67 = vsel %vm59, %v46, %v49
    %v68 = vsel %vm62, %v55, 920167782
    %v69 = vsel %vm61, %v52, %v68
    %v70 = vsel %vm60, %v67, %v69
    %v71 = vsel %vm59, %v49, %v52
    %v72 = vsel %vm62, %v58, 1326507024
    %v73 = vsel %vm61, %v55, %v72
    %v74 = vsel %vm60, %v71, %v73
    %v75 = vshll.u32 %v35, 8
    %v76 = vand.u32 %v75, 65535
    %v77 = vshrl.u32 %v75, 16
    %v78 = vand.u32 %v74, 65535
    %v79 = vshrl.u32 %v74, 16
    %v80 = vmul.u32 %v76, %v78
    %v81 = vmul.u32 %v76, %v79
    %v82 = vmul.u32 %v77, %v78
    %v83 = vmul.u32 %v77, %v79
    %v84 = vshll.u32 %v81, 16
    %v85 = vshrl.u32 %v81, 16
    %v86 = vshll.u32 %v82, 16
    %v87 = vshrl.u32 %v82, 16
    %vm88 = vc.u32 %v80, %v84
    %v89 = vsel %vm88, 1, 0
    %v90 = vadd.s32 %v80, %v84
    %v91 = vadd.s32 %v83, %v89
    %vm92 = vc.u32 %v90, %v86
    %v93 = vsel %vm92, 1, 0
    %v94 = vadd.s32 %v90, %v86
    %v95 = vadd.s32 %v91, %v93
    %v96 = vadd.s32 %v95, %v85
    %v97 = vadd.s32 %v96, %v87
    %v98 = vand.u32 %v75, 65535
    %v99 = vshrl.u32 %v75, 16
    %v100 = vand.u32 %v70, 65535
    %v101 = vshrl.u32 %v70, 16
    %v102 = vmul.u32 %v98, %v100
    %v103 = vmul.u32 %v98, %v101
    %v104 = vmul.u32 %v99, %v100
    %v105 = vmul.u32 %v99, %v101
    %v106 = vshll.u32 %v103, 16
    %v107 = vshrl.u32 %v103, 16
    %v108 = vshll.u32 %v104, 16
    %v109 = vshrl.u32 %v104, 16
    %vm110 = vc.u32 %v102, %v106
    %v111 = vsel %vm110, 1, 0
    %v112 = vadd.s32 %v102, %v106
    %v113 = vadd.s32 %v105, %v111
    %vm114 = vc.u32 %v112, %v108
    %v115 = vsel %vm114, 1, 0
    %v116 = vadd.s32 %v112, %v108
    %v117 = vadd.s32 %v113, %v115
    %v118 = vadd.s32 %v117, %v107
    %v119 = vadd.s32 %v118, %v109
    %v120 = vmul.u32 %v75, %v66
    %v121 = vadd.s32 %v97, %v116
    %vm122 = vc.u32 %v97, %v116
    %v123 = vadd.s32 %v119, 1
    %v124 = vsel %vm122, %v123, %v119
    %v125 = vadd.s32 %v120, %v124
    %v126 = vadd.s32 %v125, 536870912
    %v127 = vshrl.u32 %v126, 30
    %v128 = vshll.u32 %v127, 30
    %v129 = vsub.s32 %v125, %v128
    %vm130 = vcmp.lt.s32.totalorder %v129, 0
    %v131 = vsub.s32 0, %v129
    %v132 = vsel %vm130, %v131, %v129
    %v133 = vclz %v132
    %v134 = vsub.s32 %v133, 2
    %vm135 = vcmp.gt.s32.totalorder 0, %v134
    %v136 = vsel %vm135, 0, %v134
    %v137 = vsub.s32 32, %v136
    %v138 = vshll.u32 %v129, %v136
    %v139 = vshrl.u32 %v121, %v137
    %v140 = vor.u32 %v138, %v139
    %v141 = vsub.s32 4294967266, %v136
    %v142 = vadd.s32 %v141, 127
    %v143 = vshll.u32 %v142, 23
    %v144 = vor.u32 4788187, %v143
    %v145 = vand.u32 2147483647, %v144
    %v147 = vcvt.s32.f32 %v140
    %v148 = vmul.f32 %v147, %v145
    %v149 = vxor.u32 %v148, 2147483648
    %v150 = vsel %vm29, %v149, %v148
    %v151 = vsub.s32 4, %v127
    %v152 = vsel %vm29, %v151, %v127
    %v153 = vsel %vm28, %v23, %v150
    %v154 = vsel %vm28, 0, %v152
    %v155 = vmul.f32 %v153, %v153
    %v156 = vmul.f32 %v155, -0.001358992
    %v157 = vadd.f32 %v156, 0.041655596
    %v158 = vmul.f32 %v155, %v157
    %v159 = vadd.f32 %v158, -0.4999988
    %v160 = vmul.f32 %v155, %v159
    %v161 = vadd.f32 1.0, %v160
    %v162 = vmul.f32 %v153, %v153
    %v163 = vmul.f32 %v162, -0.00019511016
    %v164 = vadd.f32 %v163, 0.008332121
    %v165 = vmul.f32 %v162, %v164
    %v166 = vadd.f32 %v165, -0.16666654
    %v167 = vmul.f32 %v162, %v166
    %v168 = vadd.f32 %v167, 1.0
    %v169 = vmul.f32 %v168, %v153
    %vm170 = vweird.f32 %v23
    %v171 = vadd.s32 %v154, 3
    %v172 = vand.u32 %v171, 3
    %vm173 = vcmp.lt.s32.totalorder %v172, 2
    %vm174 = vcmp.eq.s32.totalorder %v172, 0
    %v175 = vxor.u32 %v169, 2147483648
    %v176 = vsel %vm174, %v161, %v175
    %vm177 = vcmp.eq.s32.totalorder %v172, 2
    %v178 = vxor.u32 %v161, 2147483648
    %v179 = vsel %vm177, %v178, %v169
    %v180 = vsel %vm173, %v176, %v179
    %v181 = vsel %vm170, nan, %v180
    %v182 = vand.u32 2147483647, %v23
    %vm183 = vcmp.le.f32.partialorder %v182, 0.7853982
    %vm184 = vcmp.lt.s32.totalorder %v23, 0
    %v185 = vand.u32 %v23, 2139095040
    %v186 = vshrl.u32 %v185, 23
    %v187 = vsub.s32 %v186, 127
    %v188 = vand.u32 2147483647, %v23
    %v189 = vand.u32 %v188, 8388607
    %v190 = vor.u32 %v189, 8388608
    %v191 = vsub.s32 0, %v190
    %v192 = vadd.s32 %v187, 1
    %vm193 = vcmp.gt.s32.totalorder %v192, 0
    %v194 = vsel %vm193, %v192, 0
    %v195 = vshrl.u32 %v194, 5
    %v196 = vand.u32 %v194, 31
    %v197 = vsub.s32 32, %v196
    %v198 = vshrl.u32 683565275, %v197
    %v199 = vshll.u32 683565275, %v196
    %v200 = vshrl.u32 2475754826, %v197
    %v201 = vor.u32 %v199, %v200
    %v202 = vshll.u32 2475754826, %v196
    %v203 = vshrl.u32 2131351028, %v197
    %v204 = vor.u32 %v202, %v203
    %v205 = vshll.u32 2131351028, %v196
    %v206 = vshrl.u32 2102212464, %v197
    %v207 = vor.u32 %v205, %v206
    %v208 = vshll.u32 2102212464, %v196
    %v209 = vshrl.u32 920167782, %v197
    %v210 = vor.u32 %v208, %v209
    %v211 = vshll.u32 920167782, %v196
    %v212 = vshrl.u32 1326507024, %v197
    %v213 = vor.u32 %v211, %v212
    %vm214 = vcmp.lt.s32.totalorder %v195, 1
    %vm215 = vcmp.lt.s32.totalorder %v195, 2
    %vm216 = vcmp.lt.s32.totalorder %v195, 3
    %vm217 = vcmp.lt.s32.totalorder %v195, 4
    %v218 = vsel %vm214, %v198, %v201
    %v219 = vsel %vm217, %v207, 2102212464
    %v220 = vsel %vm216, %v204, %v219
    %v221 = vsel %vm215, %v218, %v220
    %v222 = vsel %vm214, %v201, %v204
    %v223 = vsel %vm217, %v210, 920167782
    %v224 = vsel %vm216, %v207, %v223
    %v225 = vsel %vm215, %v222, %v224
    %v226 = vsel %vm214, %v204, %v207
    %v227 = vsel %vm217, %v213, 1326507024
    %v228 = vsel %vm216, %v210, %v227
    %v229 = vsel %vm215, %v226, %v228
    %v230 = vshll.u32 %v190, 8
    %v231 = vand.u32 %v230, 65535
    %v232 = vshrl.u32 %v230, 16
    %v233 = vand.u32 %v229, 65535
    %v234 = vshrl.u32 %v229, 16
    %v235 = vmul.u32 %v231, %v233
    %v236 = vmul.u32 %v231, %v234
    %v237 = vmul.u32 %v232, %v233
    %v238 = vmul.u32 %v232, %v234
    %v239 = vshll.u32 %v236, 16
    %v240 = vshrl.u32 %v236, 16
    %v241 = vshll.u32 %v237, 16
    %v242 = vshrl.u32 %v237, 16
    %vm243 = vc.u32 %v235, %v239
    %v244 = vsel %vm243, 1, 0
    %v245 = vadd.s32 %v235, %v239
    %v246 = vadd.s32 %v238, %v244
    %vm247 = vc.u32 %v245, %v241
    %v248 = vsel %vm247, 1, 0
    %v249 = vadd.s32 %v245, %v241
    %v250 = vadd.s32 %v246, %v248
    %v251 = vadd.s32 %v250, %v240
    %v252 = vadd.s32 %v251, %v242
    %v253 = vand.u32 %v230, 65535
    %v254 = vshrl.u32 %v230, 16
    %v255 = vand.u32 %v225, 65535
    %v256 = vshrl.u32 %v225, 16
    %v257 = vmul.u32 %v253, %v255
    %v258 = vmul.u32 %v253, %v256
    %v259 = vmul.u32 %v254, %v255
    %v260 = vmul.u32 %v254, %v256
    %v261 = vshll.u32 %v258, 16
    %v262 = vshrl.u32 %v258, 16
    %v263 = vshll.u32 %v259, 16
    %v264 = vshrl.u32 %v259, 16
    %vm265 = vc.u32 %v257, %v261
    %v266 = vsel %vm265, 1, 0
    %v267 = vadd.s32 %v257, %v261
    %v268 = vadd.s32 %v260, %v266
    %vm269 = vc.u32 %v267, %v263
    %v270 = vsel %vm269, 1, 0
    %v271 = vadd.s32 %v267, %v263
    %v272 = vadd.s32 %v268, %v270
    %v273 = vadd.s32 %v272, %v262
    %v274 = vadd.s32 %v273, %v264
    %v275 = vmul.u32 %v230, %v221
    %v276 = vadd.s32 %v252, %v271
    %vm277 = vc.u32 %v252, %v271
    %v278 = vadd.s32 %v274, 1
    %v279 = vsel %vm277, %v278, %v274
    %v280 = vadd.s32 %v275, %v279
    %v281 = vadd.s32 %v280, 536870912
    %v282 = vshrl.u32 %v281, 30
    %v283 = vshll.u32 %v282, 30
    %v284 = vsub.s32 %v280, %v283
    %vm285 = vcmp.lt.s32.totalorder %v284, 0
    %v286 = vsub.s32 0, %v284
    %v287 = vsel %vm285, %v286, %v284
    %v288 = vclz %v287
    %v289 = vsub.s32 %v288, 2
    %vm290 = vcmp.gt.s32.totalorder 0, %v289
    %v291 = vsel %vm290, 0, %v289
    %v292 = vsub.s32 32, %v291
    %v293 = vshll.u32 %v284, %v291
    %v294 = vshrl.u32 %v276, %v292
    %v295 = vor.u32 %v293, %v294
    %v296 = vsub.s32 4294967266, %v291
    %v297 = vadd.s32 %v296, 127
    %v298 = vshll.u32 %v297, 23
    %v299 = vor.u32 4788187, %v298
    %v300 = vand.u32 2147483647, %v299
    %v302 = vcvt.s32.f32 %v295
    %v303 = vmul.f32 %v302, %v300
    %v304 = vxor.u32 %v303, 2147483648
    %v305 = vsel %vm184, %v304, %v303
    %v306 = vsub.s32 4, %v282
    %v307 = vsel %vm184, %v306, %v282
    %v308 = vsel %vm183, %v23, %v305
    %v309 = vsel %vm183, 0, %v307
    %v310 = vmul.f32 %v308, %v308
    %v311 = vmul.f32 %v310, -0.001358992
    %v312 = vadd.f32 %v311, 0.041655596
    %v313 = vmul.f32 %v310, %v312
    %v314 = vadd.f32 %v313, -0.4999988
    %v315 = vmul.f32 %v310, %v314
    %v316 = vadd.f32 1.0, %v315
    %v317 = vmul.f32 %v308, %v308
    %v318 = vmul.f32 %v317, -0.00019511016
    %v319 = vadd.f32 %v318, 0.008332121
    %v320 = vmul.f32 %v317, %v319
    %v321 = vadd.f32 %v320, -0.16666654
    %v322 = vmul.f32 %v317, %v321
    %v323 = vadd.f32 %v322, 1.0
    %v324 = vmul.f32 %v323, %v308
    %vm325 = vweird.f32 %v23
    %v326 = vand.u32 %v309, 3
    %vm327 = vcmp.lt.s32.totalorder %v326, 2
    %vm328 = vcmp.eq.s32.totalorder %v326, 0
    %v329 = vxor.u32 %v324, 2147483648
    %v330 = vsel %vm328, %v316, %v329
    %vm331 = vcmp.eq.s32.totalorder %v326, 2
    %v332 = vxor.u32 %v316, 2147483648
    %v333 = vsel %vm331, %v332, %v324
    %v334 = vsel %vm327, %v330, %v333
    %v335 = vsel %vm325, nan, %v334
    %v336 = vsel %vm26, %v181, %v335
    %vm337 = vcmp.eq.s32.totalorder %v25, 0
    %v338 = vsel %vm337, %v18, %v336
    %vm339 = vcmask 138240
    %340 = vst.msk [vmem:[#allocation2] sm:$0xff] %vm339, %v338
    // Predicated region
    $region10: #{tpu_custom_call.1} parent=1 // pred_check
      _
    $region11: #{tpu_custom_call.1} parent=1 // pred_check_branch
      %342 = sbr.rel (0) target = $region13
    $region12: #{tpu_custom_call.1} parent=1 // pred_region
      %344 = vsyncadd [#allocation3], 0
      %s346 = sshll.u32 [#allocation2], 4
      %s347 = int_to_ptr.vmem [resolvable:$true] %s346
      %s348 = sshll.u32 %s2, 4
      %s349 = int_to_ptr.hbm [resolvable:$true] %s348
      %351 = dma.vmem_to_hbm [thread:$0]  %s347, 128, %s349, [#allocation3]
    $region13: #{tpu_custom_call.1} parent=1 // pred_fallthru
      _
    // Predicated region
    $region14: #{tpu_custom_call.1} parent=1 // pred_check
      _
    $region15: #{tpu_custom_call.1} parent=1 // pred_check_branch
      %353 = sbr.rel (0) target = $region17
    $region16: #{tpu_custom_call.1} parent=1 // pred_region
      %355 = dma.done [#allocation3], 128
    $region17: #{tpu_custom_call.1} parent=1 // pred_fallthru
      _
    %356 = vsyncpa [#allocation3], 1

</llo_original>
